<compile_context>
chip_gen: v7x
topology: tpu7x:2x2x1
jax: 0.10.0
libtpu: 0.0.40
codegen_flags: <defaults>
</compile_context>

<pallas_src>
import functools

import jax
import jax.numpy as jnp
from jax import lax
from jax.experimental import pallas as pl
from jax.experimental.pallas import tpu as pltpu


def _lstm_recurrence_kernel(
    # inputs
    gx_ref,      # (T_CHUNK, B, 4C)  precomputed x-side gates + fused bias, order [i,f,o,g]
    mask_ref,    # (T_CHUNK, B, 1)
    h0_ref,      # (B, C)
    c0_ref,      # (B, C)
    w_hh_ref,    # (C, 4C)           columns permuted to [i,f,o,g]
    # outputs
    hid_ref,     # (T_CHUNK, B, C)   per-timestep hidden states (lane-dense)
    h_out_ref,   # (B, C)            also serves as the h carry across grid steps
    c_out_ref,   # (B, C)            also serves as the c carry across grid steps
    *,
    cell_size: int,
):
    C = cell_size
    t_chunk = gx_ref.shape[0]

    # Initialize the carried state on the first chunk only; afterwards the
    # resident output refs hold the state from the previous chunk.
    @pl.when(pl.program_id(0) == 0)
    def _():
        h_out_ref[...] = h0_ref[...]
        c_out_ref[...] = c0_ref[...]

    w_hh = w_hh_ref[...]                       # hoisted out of the time loop

    def step(t, carry):
        h, c = carry
        m = mask_ref[t]                        # (B, 1)
        keep = 1.0 - m
        h = h * keep
        c = c * keep

        # Only the h-side matmul remains in the serial recurrence.
        gates = gx_ref[t] + jnp.dot(h, w_hh, preferred_element_type=jnp.float32)

        # Gate order [i, f, o, g]: sigmoid gates are one contiguous 3C slice.
        # sigmoid(x) == 0.5 * (tanh(0.5 * x) + 1)  -> one EUP op per gate.
        sig = 0.5 * (jnp.tanh(0.5 * gates[:, : 3 * C]) + 1.0)
        g_g = jnp.tanh(gates[:, 3 * C:])
        i_g = sig[:, 0 * C:1 * C]
        f_g = sig[:, 1 * C:2 * C]
        o_g = sig[:, 2 * C:3 * C]

        c_new = f_g * c + i_g * g_g
        h_new = o_g * jnp.tanh(c_new)

        hid_ref[t] = h_new                     # lane-dense (B, C) store
        return (h_new, c_new)

    h0 = h_out_ref[...]
    c0 = c_out_ref[...]
    h_fin, c_fin = lax.fori_loop(0, t_chunk, step, (h0, c0), unroll=True)

    h_out_ref[...] = h_fin
    c_out_ref[...] = c_fin


def _reorder_gate_cols(w, cell_size):
    """Permute last-axis gate blocks from PyTorch (i,f,g,o) to (i,f,o,g)."""
    C = cell_size
    return jnp.concatenate(
        [w[..., : 2 * C], w[..., 3 * C: 4 * C], w[..., 2 * C: 3 * C]], axis=-1
    )


def vnet_lstm_forward(xs, hs, h_masks, params, *, t_chunk=4):
    """Pallas implementation of VNetLSTM.forward.

    xs:      (T, B, ob_dim) float32
    hs:      tuple of (B*cell,) or (B, cell) arrays (h, c)
    h_masks: (T, B, 1) float32
    params:  dict of pre-transposed weights, PyTorch gate order (i,f,g,o)
    returns: (outs (T, B, 1), (h_N, c_N) each (B, cell))
    """
    T, B, _ = xs.shape
    C = params["w_hh"].shape[0]

    if t_chunk is None or t_chunk <= 0 or (T % t_chunk) != 0:
        t_chunk = T
    grid = (T // t_chunk,)

    h0 = hs[0].reshape(B, C)
    c0 = hs[1].reshape(B, C)

    # --- Hoisted batched GEMMs (plain XLA, fill the MXU rows) ----------------
    # input Linear + ReLU for all timesteps at once.
    xh = jax.nn.relu(xs @ params["w_in"] + params["b_in"])          # (T, B, H)
    # x-side gate projection + fused bias (b_ih + b_hh), gate order [i,f,o,g].
    w_ih_r = _reorder_gate_cols(params["w_ih"], C)
    w_hh_r = _reorder_gate_cols(params["w_hh"], C)
    b_fused = _reorder_gate_cols(params["b_ih"] + params["b_hh"], C)
    gx = xh @ w_ih_r + b_fused                                      # (T, B, 4C)

    # --- Serial recurrence in Pallas ----------------------------------------
    kernel = functools.partial(_lstm_recurrence_kernel, cell_size=C)

    out_shapes = (
        jax.ShapeDtypeStruct((T, B, C), jnp.float32),   # hiddens
        jax.ShapeDtypeStruct((B, C), jnp.float32),      # h_N
        jax.ShapeDtypeStruct((B, C), jnp.float32),      # c_N
    )

    hiddens, h_n, c_n = pl.pallas_call(
        kernel,
        out_shape=out_shapes,
        grid_spec=pltpu.PrefetchScalarGridSpec(
            num_scalar_prefetch=0,
            grid=grid,
            in_specs=[
                pl.BlockSpec((t_chunk, B, 4 * C), lambda i: (i, 0, 0)),  # gx
                pl.BlockSpec((t_chunk, B, 1), lambda i: (i, 0, 0)),      # masks
                pl.BlockSpec((B, C), lambda i: (0, 0)),                  # h0
                pl.BlockSpec((B, C), lambda i: (0, 0)),                  # c0
                pl.BlockSpec((C, 4 * C), lambda i: (0, 0)),              # w_hh
            ],
            out_specs=[
                pl.BlockSpec((t_chunk, B, C), lambda i: (i, 0, 0)),      # hiddens
                pl.BlockSpec((B, C), lambda i: (0, 0)),                  # h_N (carry)
                pl.BlockSpec((B, C), lambda i: (0, 0)),                  # c_N (carry)
            ],
        ),
        compiler_params=pltpu.CompilerParams(
            dimension_semantics=("arbitrary",),          # sequential over time chunks
            vmem_limit_bytes=32 * 1024 * 1024,           # safe on v5e/v6e/v7x
        ),
    )(gx, h_masks, h0, c0, w_hh_r)

    # --- Output Linear as one batched GEMM over all hiddens ------------------
    outs = hiddens @ params["w_out"] + params["b_out"]               # (T, B, 1)
    return outs, (h_n, c_n)


def vnet_lstm_reference(xs, hs, h_masks, params):
    """Pure-JAX reference matching the PyTorch forward semantics."""
    T, B, _ = xs.shape
    C = params["w_hh"].shape[0]
    h = hs[0].reshape(B, C)
    c = hs[1].reshape(B, C)
    xh = jax.nn.relu(xs @ params["w_in"] + params["b_in"])   # (T, B, H)
    hiddens = []
    for t in range(T):
        m = h_masks[t]
        h = h * (1.0 - m)
        c = c * (1.0 - m)
        gates = xh[t] @ params["w_ih"] + params["b_ih"] + h @ params["w_hh"] + params["b_hh"]
        i_g = jax.nn.sigmoid(gates[:, 0 * C:1 * C])
        f_g = jax.nn.sigmoid(gates[:, 1 * C:2 * C])
        g_g = jnp.tanh(gates[:, 2 * C:3 * C])
        o_g = jax.nn.sigmoid(gates[:, 3 * C:4 * C])
        c = f_g * c + i_g * g_g
        h = o_g * jnp.tanh(c)
        hiddens.append(h)
    hiddens = jnp.stack(hiddens, axis=0)
    outs = hiddens @ params["w_out"] + params["b_out"]
    return outs, (h, c)


def init_params(key, ob_dim, h_size, cell_size):
    """Deterministic synthetic parameter init (shapes match nn.Linear / nn.LSTMCell,
    stored transposed as (in_features, out_features), gate order (i,f,g,o))."""
    ks = jax.random.split(key, 6)
    s_in = 1.0 / jnp.sqrt(ob_dim)
    s_cell = 1.0 / jnp.sqrt(cell_size)
    params = {
        "w_in": jax.random.uniform(ks[0], (ob_dim, h_size), jnp.float32, -s_in, s_in),
        "b_in": jax.random.uniform(ks[1], (1, h_size), jnp.float32, -s_in, s_in),
        "w_ih": jax.random.uniform(ks[2], (h_size, 4 * cell_size), jnp.float32, -s_cell, s_cell),
        "b_ih": jax.random.uniform(ks[3], (1, 4 * cell_size), jnp.float32, -s_cell, s_cell),
        "w_hh": jax.random.uniform(ks[4], (cell_size, 4 * cell_size), jnp.float32, -s_cell, s_cell),
        "b_hh": jax.random.uniform(ks[5], (1, 4 * cell_size), jnp.float32, -s_cell, s_cell),
        # mini_weight_init: small output-layer weights, zero bias.
        "w_out": jnp.full((cell_size, 1), 0.01, jnp.float32),
        "b_out": jnp.zeros((1, 1), jnp.float32),
    }
    return params


if __name__ == "__main__":
    T, B = 8, 4
    ob_dim, h_size, cell_size = 16, 32, 32

    key = jax.random.PRNGKey(0)
    k_x, k_m, k_p = jax.random.split(key, 3)

    xs = jax.random.normal(k_x, (T, B, ob_dim), jnp.float32)
    h_masks = (jax.random.uniform(k_m, (T, B, 1)) < 0.2).astype(jnp.float32)
    h0 = jnp.zeros((B, cell_size), jnp.float32)
    c0 = jnp.zeros((B, cell_size), jnp.float32)
    params = init_params(k_p, ob_dim, h_size, cell_size)

    fwd = jax.jit(functools.partial(vnet_lstm_forward, t_chunk=4))
    outs, (h_n, c_n) = fwd(xs, (h0, c0), h_masks, params)
    jax.block_until_ready((outs, h_n, c_n))

    # Sanity-check against the pure-JAX reference (f32 everywhere; the tiny
    # differences come from bias-fusion reassociation and sigmoid-via-tanh).
    ref_outs, (ref_h, ref_c) = vnet_lstm_reference(xs, (h0, c0), h_masks, params)
    assert outs.shape == (T, B, 1)
    assert jnp.allclose(outs, ref_outs, atol=1e-4, rtol=1e-4), "outs mismatch"
    assert jnp.allclose(h_n, ref_h, atol=1e-4, rtol=1e-4), "h_n mismatch"
    assert jnp.allclose(c_n, ref_c, atol=1e-4, rtol=1e-4), "c_n mismatch"

    print("KERNEL_OK")
</pallas_src>

<mosaic_0001>
module attributes {stable_mosaic.version = 11 : i64} {
  func.func @_lstm_recurrence_kernel(%arg0: i32, %arg1: memref<4x4x128xf32, #tpu.memory_space<vmem>>, %arg2: memref<4x4x1xf32, #tpu.memory_space<vmem>>, %arg3: memref<4x32xf32, #tpu.memory_space<vmem>>, %arg4: memref<4x32xf32, #tpu.memory_space<vmem>>, %arg5: memref<32x128xf32, #tpu.memory_space<vmem>>, %arg6: memref<4x4x32xf32, #tpu.memory_space<vmem>>, %arg7: memref<4x32xf32, #tpu.memory_space<vmem>>, %arg8: memref<4x32xf32, #tpu.memory_space<vmem>>) attributes {dimension_semantics = [#tpu.dimension_semantics<arbitrary>], iteration_bounds = array<i64: 2>, scalar_prefetch = 0 : i64, scratch_operands = 0 : i64, tpu.core_type = #tpu.core_type<tc>, window_params = [{transform_indices = @transform_0, window_bounds = array<i64: 4, 4, 128>}, {transform_indices = @transform_1, window_bounds = array<i64: 4, 4, 1>}, {pipeline_mode = #tpu.pipeline_mode<synchronous>, transform_indices = @transform_2, window_bounds = array<i64: 4, 32>}, {pipeline_mode = #tpu.pipeline_mode<synchronous>, transform_indices = @transform_3, window_bounds = array<i64: 4, 32>}, {pipeline_mode = #tpu.pipeline_mode<synchronous>, transform_indices = @transform_4, window_bounds = array<i64: 32, 128>}, {transform_indices = @transform_5, window_bounds = array<i64: 4, 4, 32>}, {pipeline_mode = #tpu.pipeline_mode<synchronous>, transform_indices = @transform_6, window_bounds = array<i64: 4, 32>}, {pipeline_mode = #tpu.pipeline_mode<synchronous>, transform_indices = @transform_7, window_bounds = array<i64: 4, 32>}]} {
    %c0_i32 = arith.constant 0 : i32
    %0 = arith.cmpi eq, %arg0, %c0_i32 : i32
    %1 = arith.extui %0 : i1 to i32
    %c0_i32_0 = arith.constant 0 : i32
    %2 = arith.cmpi ne, %1, %c0_i32_0 : i32
    scf.if %2 {
      %c0_54 = arith.constant 0 : index
      %c0_55 = arith.constant 0 : index
      %152 = vector.load %arg3[%c0_54, %c0_55] : memref<4x32xf32, #tpu.memory_space<vmem>>, vector<4x32xf32>
      %c0_56 = arith.constant 0 : index
      %c0_57 = arith.constant 0 : index
      %153 = vector.load %arg7[%c0_56, %c0_57] : memref<4x32xf32, #tpu.memory_space<vmem>>, vector<4x32xf32>
      tpu.vector_store %arg7[%c0_56, %c0_57], %152 {strides = array<i32>} : memref<4x32xf32, #tpu.memory_space<vmem>>, vector<4x32xf32>,
      %c0_58 = arith.constant 0 : index
      %c0_59 = arith.constant 0 : index
      %154 = vector.load %arg4[%c0_58, %c0_59] : memref<4x32xf32, #tpu.memory_space<vmem>>, vector<4x32xf32>
      %c0_60 = arith.constant 0 : index
      %c0_61 = arith.constant 0 : index
      %155 = vector.load %arg8[%c0_60, %c0_61] : memref<4x32xf32, #tpu.memory_space<vmem>>, vector<4x32xf32>
      tpu.vector_store %arg8[%c0_60, %c0_61], %154 {strides = array<i32>} : memref<4x32xf32, #tpu.memory_space<vmem>>, vector<4x32xf32>,
    } else {
    }
    %c0 = arith.constant 0 : index
    %c0_1 = arith.constant 0 : index
    %3 = vector.load %arg5[%c0, %c0_1] : memref<32x128xf32, #tpu.memory_space<vmem>>, vector<32x128xf32>
    %c0_2 = arith.constant 0 : index
    %c0_3 = arith.constant 0 : index
    %4 = vector.load %arg7[%c0_2, %c0_3] : memref<4x32xf32, #tpu.memory_space<vmem>>, vector<4x32xf32>
    %c0_4 = arith.constant 0 : index
    %c0_5 = arith.constant 0 : index
    %5 = vector.load %arg8[%c0_4, %c0_5] : memref<4x32xf32, #tpu.memory_space<vmem>>, vector<4x32xf32>
    %c0_i32_6 = arith.constant 0 : i32
    %6 = arith.index_cast %c0_i32_6 : i32 to index
    %c0_7 = arith.constant 0 : index
    %c0_8 = arith.constant 0 : index
    %7 = vector.load %arg2[%6, %c0_7, %c0_8] : memref<4x4x1xf32, #tpu.memory_space<vmem>>, vector<1x4x1xf32>
    %8 = vector.shape_cast %7 : vector<1x4x1xf32> to vector<4x1xf32>
    %cst = arith.constant 1.000000e+00 : f32
    %9 = vector.broadcast %cst : f32 to vector<4x1xf32>
    %10 = arith.subf %9, %8 : vector<4x1xf32>
    %11 = vector.broadcast %10 : vector<4x1xf32> to vector<4x32xf32>
    %12 = arith.mulf %4, %11 : vector<4x32xf32>
    %13 = vector.broadcast %10 : vector<4x1xf32> to vector<4x32xf32>
    %14 = arith.mulf %5, %13 : vector<4x32xf32>
    %15 = arith.index_cast %c0_i32_6 : i32 to index
    %c0_9 = arith.constant 0 : index
    %c0_10 = arith.constant 0 : index
    %16 = vector.load %arg1[%15, %c0_9, %c0_10] : memref<4x4x128xf32, #tpu.memory_space<vmem>>, vector<1x4x128xf32>
    %17 = vector.shape_cast %16 : vector<1x4x128xf32> to vector<4x128xf32>
    %cst_11 = arith.constant dense<0.000000e+00> : vector<4x128xf32>
    %18 = tpu.matmul %12, %3, %cst_11 {dimension_numbers = #tpu.dot_dimension_numbers<[1], [0], [0], [1], [0, 0, 1, 1], [], []>} : vector<4x32xf32>, vector<32x128xf32>, vector<4x128xf32> -> vector<4x128xf32>
    %19 = arith.addf %17, %18 : vector<4x128xf32>
    %20 = vector.extract_strided_slice %19 {offsets = [0, 0], sizes = [4, 96], strides = [1, 1]} : vector<4x128xf32> to vector<4x96xf32>
    %cst_12 = arith.constant 5.000000e-01 : f32
    %21 = vector.broadcast %cst_12 : f32 to vector<4x96xf32>
    %22 = arith.mulf %21, %20 : vector<4x96xf32>
    %23 = math.tanh %22 : vector<4x96xf32>
    %cst_13 = arith.constant 1.000000e+00 : f32
    %24 = vector.broadcast %cst_13 : f32 to vector<4x96xf32>
    %25 = arith.addf %23, %24 : vector<4x96xf32>
    %cst_14 = arith.constant 5.000000e-01 : f32
    %26 = vector.broadcast %cst_14 : f32 to vector<4x96xf32>
    %27 = arith.mulf %26, %25 : vector<4x96xf32>
    %28 = vector.extract_strided_slice %19 {offsets = [0, 96], sizes = [4, 32], strides = [1, 1]} : vector<4x128xf32> to vector<4x32xf32>
    %29 = math.tanh %28 : vector<4x32xf32>
    %30 = vector.extract_strided_slice %27 {offsets = [0, 0], sizes = [4, 32], strides = [1, 1]} : vector<4x96xf32> to vector<4x32xf32>
    %31 = vector.extract_strided_slice %27 {offsets = [0, 32], sizes = [4, 32], strides = [1, 1]} : vector<4x96xf32> to vector<4x32xf32>
    %32 = vector.extract_strided_slice %27 {offsets = [0, 64], sizes = [4, 32], strides = [1, 1]} : vector<4x96xf32> to vector<4x32xf32>
    %33 = arith.mulf %31, %14 : vector<4x32xf32>
    %34 = arith.mulf %30, %29 : vector<4x32xf32>
    %35 = arith.addf %33, %34 : vector<4x32xf32>
    %36 = math.tanh %35 : vector<4x32xf32>
    %37 = arith.mulf %32, %36 : vector<4x32xf32>
    %38 = arith.index_cast %c0_i32_6 : i32 to index
    %c0_15 = arith.constant 0 : index
    %c0_16 = arith.constant 0 : index
    %39 = vector.load %arg6[%38, %c0_15, %c0_16] : memref<4x4x32xf32, #tpu.memory_space<vmem>>, vector<1x4x32xf32>
    %40 = vector.shape_cast %39 : vector<1x4x32xf32> to vector<4x32xf32>
    %41 = vector.shape_cast %37 : vector<4x32xf32> to vector<1x4x32xf32>
    tpu.vector_store %arg6[%38, %c0_15, %c0_16], %41 {strides = array<i32>} : memref<4x4x32xf32, #tpu.memory_space<vmem>>, vector<1x4x32xf32>,
    %c1_i32 = arith.constant 1 : i32
    %42 = arith.index_cast %c1_i32 : i32 to index
    %c0_17 = arith.constant 0 : index
    %c0_18 = arith.constant 0 : index
    %43 = vector.load %arg2[%42, %c0_17, %c0_18] : memref<4x4x1xf32, #tpu.memory_space<vmem>>, vector<1x4x1xf32>
    %44 = vector.shape_cast %43 : vector<1x4x1xf32> to vector<4x1xf32>
    %cst_19 = arith.constant 1.000000e+00 : f32
    %45 = vector.broadcast %cst_19 : f32 to vector<4x1xf32>
    %46 = arith.subf %45, %44 : vector<4x1xf32>
    %47 = vector.broadcast %46 : vector<4x1xf32> to vector<4x32xf32>
    %48 = arith.mulf %37, %47 : vector<4x32xf32>
    %49 = vector.broadcast %46 : vector<4x1xf32> to vector<4x32xf32>
    %50 = arith.mulf %35, %49 : vector<4x32xf32>
    %51 = arith.index_cast %c1_i32 : i32 to index
    %c0_20 = arith.constant 0 : index
    %c0_21 = arith.constant 0 : index
    %52 = vector.load %arg1[%51, %c0_20, %c0_21] : memref<4x4x128xf32, #tpu.memory_space<vmem>>, vector<1x4x128xf32>
    %53 = vector.shape_cast %52 : vector<1x4x128xf32> to vector<4x128xf32>
    %cst_22 = arith.constant dense<0.000000e+00> : vector<4x128xf32>
    %54 = tpu.matmul %48, %3, %cst_22 {dimension_numbers = #tpu.dot_dimension_numbers<[1], [0], [0], [1], [0, 0, 1, 1], [], []>} : vector<4x32xf32>, vector<32x128xf32>, vector<4x128xf32> -> vector<4x128xf32>
    %55 = arith.addf %53, %54 : vector<4x128xf32>
    %56 = vector.extract_strided_slice %55 {offsets = [0, 0], sizes = [4, 96], strides = [1, 1]} : vector<4x128xf32> to vector<4x96xf32>
    %cst_23 = arith.constant 5.000000e-01 : f32
    %57 = vector.broadcast %cst_23 : f32 to vector<4x96xf32>
    %58 = arith.mulf %57, %56 : vector<4x96xf32>
    %59 = math.tanh %58 : vector<4x96xf32>
    %cst_24 = arith.constant 1.000000e+00 : f32
    %60 = vector.broadcast %cst_24 : f32 to vector<4x96xf32>
    %61 = arith.addf %59, %60 : vector<4x96xf32>
    %cst_25 = arith.constant 5.000000e-01 : f32
    %62 = vector.broadcast %cst_25 : f32 to vector<4x96xf32>
    %63 = arith.mulf %62, %61 : vector<4x96xf32>
    %64 = vector.extract_strided_slice %55 {offsets = [0, 96], sizes = [4, 32], strides = [1, 1]} : vector<4x128xf32> to vector<4x32xf32>
    %65 = math.tanh %64 : vector<4x32xf32>
    %66 = vector.extract_strided_slice %63 {offsets = [0, 0], sizes = [4, 32], strides = [1, 1]} : vector<4x96xf32> to vector<4x32xf32>
    %67 = vector.extract_strided_slice %63 {offsets = [0, 32], sizes = [4, 32], strides = [1, 1]} : vector<4x96xf32> to vector<4x32xf32>
    %68 = vector.extract_strided_slice %63 {offsets = [0, 64], sizes = [4, 32], strides = [1, 1]} : vector<4x96xf32> to vector<4x32xf32>
    %69 = arith.mulf %67, %50 : vector<4x32xf32>
    %70 = arith.mulf %66, %65 : vector<4x32xf32>
    %71 = arith.addf %69, %70 : vector<4x32xf32>
    %72 = math.tanh %71 : vector<4x32xf32>
    %73 = arith.mulf %68, %72 : vector<4x32xf32>
    %74 = arith.index_cast %c1_i32 : i32 to index
    %c0_26 = arith.constant 0 : index
    %c0_27 = arith.constant 0 : index
    %75 = vector.load %arg6[%74, %c0_26, %c0_27] : memref<4x4x32xf32, #tpu.memory_space<vmem>>, vector<1x4x32xf32>
    %76 = vector.shape_cast %75 : vector<1x4x32xf32> to vector<4x32xf32>
    %77 = vector.shape_cast %73 : vector<4x32xf32> to vector<1x4x32xf32>
    tpu.vector_store %arg6[%74, %c0_26, %c0_27], %77 {strides = array<i32>} : memref<4x4x32xf32, #tpu.memory_space<vmem>>, vector<1x4x32xf32>,
    %c2_i32 = arith.constant 2 : i32
    %78 = arith.index_cast %c2_i32 : i32 to index
    %c0_28 = arith.constant 0 : index
    %c0_29 = arith.constant 0 : index
    %79 = vector.load %arg2[%78, %c0_28, %c0_29] : memref<4x4x1xf32, #tpu.memory_space<vmem>>, vector<1x4x1xf32>
    %80 = vector.shape_cast %79 : vector<1x4x1xf32> to vector<4x1xf32>
    %cst_30 = arith.constant 1.000000e+00 : f32
    %81 = vector.broadcast %cst_30 : f32 to vector<4x1xf32>
    %82 = arith.subf %81, %80 : vector<4x1xf32>
    %83 = vector.broadcast %82 : vector<4x1xf32> to vector<4x32xf32>
    %84 = arith.mulf %73, %83 : vector<4x32xf32>
    %85 = vector.broadcast %82 : vector<4x1xf32> to vector<4x32xf32>
    %86 = arith.mulf %71, %85 : vector<4x32xf32>
    %87 = arith.index_cast %c2_i32 : i32 to index
    %c0_31 = arith.constant 0 : index
    %c0_32 = arith.constant 0 : index
    %88 = vector.load %arg1[%87, %c0_31, %c0_32] : memref<4x4x128xf32, #tpu.memory_space<vmem>>, vector<1x4x128xf32>
    %89 = vector.shape_cast %88 : vector<1x4x128xf32> to vector<4x128xf32>
    %cst_33 = arith.constant dense<0.000000e+00> : vector<4x128xf32>
    %90 = tpu.matmul %84, %3, %cst_33 {dimension_numbers = #tpu.dot_dimension_numbers<[1], [0], [0], [1], [0, 0, 1, 1], [], []>} : vector<4x32xf32>, vector<32x128xf32>, vector<4x128xf32> -> vector<4x128xf32>
    %91 = arith.addf %89, %90 : vector<4x128xf32>
    %92 = vector.extract_strided_slice %91 {offsets = [0, 0], sizes = [4, 96], strides = [1, 1]} : vector<4x128xf32> to vector<4x96xf32>
    %cst_34 = arith.constant 5.000000e-01 : f32
    %93 = vector.broadcast %cst_34 : f32 to vector<4x96xf32>
    %94 = arith.mulf %93, %92 : vector<4x96xf32>
    %95 = math.tanh %94 : vector<4x96xf32>
    %cst_35 = arith.constant 1.000000e+00 : f32
    %96 = vector.broadcast %cst_35 : f32 to vector<4x96xf32>
    %97 = arith.addf %95, %96 : vector<4x96xf32>
    %cst_36 = arith.constant 5.000000e-01 : f32
    %98 = vector.broadcast %cst_36 : f32 to vector<4x96xf32>
    %99 = arith.mulf %98, %97 : vector<4x96xf32>
    %100 = vector.extract_strided_slice %91 {offsets = [0, 96], sizes = [4, 32], strides = [1, 1]} : vector<4x128xf32> to vector<4x32xf32>
    %101 = math.tanh %100 : vector<4x32xf32>
    %102 = vector.extract_strided_slice %99 {offsets = [0, 0], sizes = [4, 32], strides = [1, 1]} : vector<4x96xf32> to vector<4x32xf32>
    %103 = vector.extract_strided_slice %99 {offsets = [0, 32], sizes = [4, 32], strides = [1, 1]} : vector<4x96xf32> to vector<4x32xf32>
    %104 = vector.extract_strided_slice %99 {offsets = [0, 64], sizes = [4, 32], strides = [1, 1]} : vector<4x96xf32> to vector<4x32xf32>
    %105 = arith.mulf %103, %86 : vector<4x32xf32>
    %106 = arith.mulf %102, %101 : vector<4x32xf32>
    %107 = arith.addf %105, %106 : vector<4x32xf32>
    %108 = math.tanh %107 : vector<4x32xf32>
    %109 = arith.mulf %104, %108 : vector<4x32xf32>
    %110 = arith.index_cast %c2_i32 : i32 to index
    %c0_37 = arith.constant 0 : index
    %c0_38 = arith.constant 0 : index
    %111 = vector.load %arg6[%110, %c0_37, %c0_38] : memref<4x4x32xf32, #tpu.memory_space<vmem>>, vector<1x4x32xf32>
    %112 = vector.shape_cast %111 : vector<1x4x32xf32> to vector<4x32xf32>
    %113 = vector.shape_cast %109 : vector<4x32xf32> to vector<1x4x32xf32>
    tpu.vector_store %arg6[%110, %c0_37, %c0_38], %113 {strides = array<i32>} : memref<4x4x32xf32, #tpu.memory_space<vmem>>, vector<1x4x32xf32>,
    %c3_i32 = arith.constant 3 : i32
    %114 = arith.index_cast %c3_i32 : i32 to index
    %c0_39 = arith.constant 0 : index
    %c0_40 = arith.constant 0 : index
    %115 = vector.load %arg2[%114, %c0_39, %c0_40] : memref<4x4x1xf32, #tpu.memory_space<vmem>>, vector<1x4x1xf32>
    %116 = vector.shape_cast %115 : vector<1x4x1xf32> to vector<4x1xf32>
    %cst_41 = arith.constant 1.000000e+00 : f32
    %117 = vector.broadcast %cst_41 : f32 to vector<4x1xf32>
    %118 = arith.subf %117, %116 : vector<4x1xf32>
    %119 = vector.broadcast %118 : vector<4x1xf32> to vector<4x32xf32>
    %120 = arith.mulf %109, %119 : vector<4x32xf32>
    %121 = vector.broadcast %118 : vector<4x1xf32> to vector<4x32xf32>
    %122 = arith.mulf %107, %121 : vector<4x32xf32>
    %123 = arith.index_cast %c3_i32 : i32 to index
    %c0_42 = arith.constant 0 : index
    %c0_43 = arith.constant 0 : index
    %124 = vector.load %arg1[%123, %c0_42, %c0_43] : memref<4x4x128xf32, #tpu.memory_space<vmem>>, vector<1x4x128xf32>
    %125 = vector.shape_cast %124 : vector<1x4x128xf32> to vector<4x128xf32>
    %cst_44 = arith.constant dense<0.000000e+00> : vector<4x128xf32>
    %126 = tpu.matmul %120, %3, %cst_44 {dimension_numbers = #tpu.dot_dimension_numbers<[1], [0], [0], [1], [0, 0, 1, 1], [], []>} : vector<4x32xf32>, vector<32x128xf32>, vector<4x128xf32> -> vector<4x128xf32>
    %127 = arith.addf %125, %126 : vector<4x128xf32>
    %128 = vector.extract_strided_slice %127 {offsets = [0, 0], sizes = [4, 96], strides = [1, 1]} : vector<4x128xf32> to vector<4x96xf32>
    %cst_45 = arith.constant 5.000000e-01 : f32
    %129 = vector.broadcast %cst_45 : f32 to vector<4x96xf32>
    %130 = arith.mulf %129, %128 : vector<4x96xf32>
    %131 = math.tanh %130 : vector<4x96xf32>
    %cst_46 = arith.constant 1.000000e+00 : f32
    %132 = vector.broadcast %cst_46 : f32 to vector<4x96xf32>
    %133 = arith.addf %131, %132 : vector<4x96xf32>
    %cst_47 = arith.constant 5.000000e-01 : f32
    %134 = vector.broadcast %cst_47 : f32 to vector<4x96xf32>
    %135 = arith.mulf %134, %133 : vector<4x96xf32>
    %136 = vector.extract_strided_slice %127 {offsets = [0, 96], sizes = [4, 32], strides = [1, 1]} : vector<4x128xf32> to vector<4x32xf32>
    %137 = math.tanh %136 : vector<4x32xf32>
    %138 = vector.extract_strided_slice %135 {offsets = [0, 0], sizes = [4, 32], strides = [1, 1]} : vector<4x96xf32> to vector<4x32xf32>
    %139 = vector.extract_strided_slice %135 {offsets = [0, 32], sizes = [4, 32], strides = [1, 1]} : vector<4x96xf32> to vector<4x32xf32>
    %140 = vector.extract_strided_slice %135 {offsets = [0, 64], sizes = [4, 32], strides = [1, 1]} : vector<4x96xf32> to vector<4x32xf32>
    %141 = arith.mulf %139, %122 : vector<4x32xf32>
    %142 = arith.mulf %138, %137 : vector<4x32xf32>
    %143 = arith.addf %141, %142 : vector<4x32xf32>
    %144 = math.tanh %143 : vector<4x32xf32>
    %145 = arith.mulf %140, %144 : vector<4x32xf32>
    %146 = arith.index_cast %c3_i32 : i32 to index
    %c0_48 = arith.constant 0 : index
    %c0_49 = arith.constant 0 : index
    %147 = vector.load %arg6[%146, %c0_48, %c0_49] : memref<4x4x32xf32, #tpu.memory_space<vmem>>, vector<1x4x32xf32>
    %148 = vector.shape_cast %147 : vector<1x4x32xf32> to vector<4x32xf32>
    %149 = vector.shape_cast %145 : vector<4x32xf32> to vector<1x4x32xf32>
    tpu.vector_store %arg6[%146, %c0_48, %c0_49], %149 {strides = array<i32>} : memref<4x4x32xf32, #tpu.memory_space<vmem>>, vector<1x4x32xf32>,
    %c4_i32 = arith.constant 4 : i32
    %c0_50 = arith.constant 0 : index
    %c0_51 = arith.constant 0 : index
    %150 = vector.load %arg7[%c0_50, %c0_51] : memref<4x32xf32, #tpu.memory_space<vmem>>, vector<4x32xf32>
    tpu.vector_store %arg7[%c0_50, %c0_51], %145 {strides = array<i32>} : memref<4x32xf32, #tpu.memory_space<vmem>>, vector<4x32xf32>,
    %c0_52 = arith.constant 0 : index
    %c0_53 = arith.constant 0 : index
    %151 = vector.load %arg8[%c0_52, %c0_53] : memref<4x32xf32, #tpu.memory_space<vmem>>, vector<4x32xf32>
    tpu.vector_store %arg8[%c0_52, %c0_53], %143 {strides = array<i32>} : memref<4x32xf32, #tpu.memory_space<vmem>>, vector<4x32xf32>,
    return
  }
  func.func @transform_0(%arg0: i32) -> (i32, i32, i32) {
    %c0_i32 = arith.constant 0 : i32
    %c0_i32_0 = arith.constant 0 : i32
    %c0_i32_1 = arith.constant 0 : i32
    return %arg0, %c0_i32, %c0_i32_0 : i32, i32, i32
  }
  func.func @transform_1(%arg0: i32) -> (i32, i32, i32) {
    %c0_i32 = arith.constant 0 : i32
    %c0_i32_0 = arith.constant 0 : i32
    %c0_i32_1 = arith.constant 0 : i32
    return %arg0, %c0_i32, %c0_i32_0 : i32, i32, i32
  }
  func.func @transform_2(%arg0: i32) -> (i32, i32) {
    %c0_i32 = arith.constant 0 : i32
    %c0_i32_0 = arith.constant 0 : i32
    %c0_i32_1 = arith.constant 0 : i32
    return %c0_i32, %c0_i32_0 : i32, i32
  }
  func.func @transform_3(%arg0: i32) -> (i32, i32) {
    %c0_i32 = arith.constant 0 : i32
    %c0_i32_0 = arith.constant 0 : i32
    %c0_i32_1 = arith.constant 0 : i32
    return %c0_i32, %c0_i32_0 : i32, i32
  }
  func.func @transform_4(%arg0: i32) -> (i32, i32) {
    %c0_i32 = arith.constant 0 : i32
    %c0_i32_0 = arith.constant 0 : i32
    %c0_i32_1 = arith.constant 0 : i32
    return %c0_i32, %c0_i32_0 : i32, i32
  }
  func.func @transform_5(%arg0: i32) -> (i32, i32, i32) {
    %c0_i32 = arith.constant 0 : i32
    %c0_i32_0 = arith.constant 0 : i32
    %c0_i32_1 = arith.constant 0 : i32
    return %arg0, %c0_i32, %c0_i32_0 : i32, i32, i32
  }
  func.func @transform_6(%arg0: i32) -> (i32, i32) {
    %c0_i32 = arith.constant 0 : i32
    %c0_i32_0 = arith.constant 0 : i32
    %c0_i32_1 = arith.constant 0 : i32
    return %c0_i32, %c0_i32_0 : i32, i32
  }
  func.func @transform_7(%arg0: i32) -> (i32, i32) {
    %c0_i32 = arith.constant 0 : i32
    %c0_i32_0 = arith.constant 0 : i32
    %c0_i32_1 = arith.constant 0 : i32
    return %c0_i32, %c0_i32_0 : i32, i32
  }
}

</mosaic_0001>

<llo_original>
// kernel: vnet_lstm_forward.1
$region0: #{vnet_lstm_forward.1}
  #allocation0 [shape = 'u32[]', space=smem, size = 0x4, offset = 0x4, fixed_abs, tag = 'smem constant byte address 0x4 - core index']
  #allocation1 [shape = 'u32[144,128]{1,0:T(1,128)}', space=vmem, size = 0x12000, scoped, tag = 'internal scratch']
  %s0 = inlined_call_operand.vmem [shape: f32[8,4,128], index: 0, kind: input, shape index: {}]
  %s1 = inlined_call_operand.vmem [shape: f32[8,4,1], index: 1, kind: input, shape index: {}]
  %s2 = inlined_call_operand.vmem [shape: f32[4,32], index: 2, kind: input, shape index: {}]
  %s3 = inlined_call_operand.vmem [shape: f32[4,32], index: 3, kind: input, shape index: {}]
  %s4 = inlined_call_operand.vmem [shape: f32[32,128], index: 4, kind: input, shape index: {}]
  %s5 = inlined_call_operand.vmem [shape: f32[8,4,32], index: 5, kind: output, shape index: {0}]
  %s6 = inlined_call_operand.hbm [shape: f32[4,32], index: 6, kind: output, shape index: {1}]
  %s7 = inlined_call_operand.hbm [shape: f32[4,32], index: 7, kind: output, shape index: {2}]
  %8 = xla_tuple %s5, %s6, %s7
  %s9 = sld [smem:[#allocation0]]
  $region73: #{vnet_lstm_forward.1} parent=0
    _
  %s11 = ssub.s32 1, %s9
  %s12 = scalar_select 0, %s11, %s9
  $region1: #{vnet_lstm_forward.1} parent=0
    #allocation2 [shape = 'u8[2048]{0}', space=vmem, size = 0x800, scoped, tag = 'output window, operand 1, single buffered']
    #allocation3 [shape = 's32[2]{0}', space=sflag, size = 0x8, scoped, tag = 'scoped memory for vnet_lstm_forward.1']
    #allocation4 [shape = 'u8[2048]{0}', space=vmem, size = 0x800, scoped, tag = 'output window, operand 2, single buffered']
    #allocation5 [shape = 's32[1]{0}', space=sflag, size = 0x4, scoped, tag = 'scoped memory for vnet_lstm_forward.1']
    %13 = vsyncpa [#allocation3], 0
    %14 = vsyncpa [#allocation5], 0
    loop: start=0, step=1, limit=4
    $region2: #{vnet_lstm_forward.1} parent=1 // loop_pre_header
      _
    $region3: #{vnet_lstm_forward.1} parent=1 // loop_header
      %s16 = sphi 0, %s20
      %p17 = scmp.ge.s32.totalorder %s16, 4
      %s26 = sphi 0, %s28
      %s29 = sphi 0, %s26
      %s30 = sphi 0, %s29
      %s46 = sphi 0, %s30
      %s52 = sphi 0, %s54
      %s55 = sphi 0, %s52
      %s56 = sphi 0, %s55
      %s72 = sphi 0, %s56
      %s76 = sphi 0, %s76
      %s78 = sphi 0, %s76
      %s79 = sphi 0, %s78
      %s93 = sphi 0, %s79
      %s97 = sphi 0, %s97
      %s99 = sphi 0, %s97
      %s100 = sphi 0, %s99
      %s114 = sphi 0, %s100
      %s118 = sphi 0, %s118
      %s120 = sphi 0, %s118
      %s121 = sphi 0, %s120
      %s135 = sphi 0, %s121
      %s141 = sphi 0, %s143
      %s144 = sphi 0, %s141
      %s145 = sphi 0, %s144
      %s161 = sphi 0, %s145
      %s165 = sphi 0, %s165
      %s167 = sphi 0, %s165
      %s168 = sphi 0, %s167
      %s182 = sphi 0, %s168
      %s186 = sphi 0, %s186
      %s188 = sphi 0, %s186
      %s189 = sphi 0, %s188
      %s203 = sphi 0, %s189
    $region4: #{vnet_lstm_forward.1} parent=1 // loop_header_branch
      %19 = sbr.rel (%p17) target = $region8
    $region5: #{vnet_lstm_forward.1} parent=1 // loop_body
      %s21 = ssub.s32 %s16, 1
      %s22 = ssub.s32 %s16, 2
      %s23 = sadd.s32 %s16, 1
      %s24 = ssub.s32 %s16, %s23
      %p25 = scmp.eq.s32.totalorder %s24, 0
      %s27 = sadd.s32 %s26, 1
      %s28 = scalar_select %p25, %s26, %s27
      %p31 = pneg %p25
      %p32 = scmp.eq.s32.totalorder %s16, 1
      %p33 = por %p31, %p32
      %p34 = scmp.ne.s32.totalorder %s26, %s29
      %p35 = scmp.eq.s32.totalorder %s16, 0
      %p36 = por %p34, %p35
      %p37 = scmp.ne.s32.totalorder %s26, %s29
      %p38 = scmp.eq.s32.totalorder %s21, 1
      %p39 = por %p37, %p38
      %p40 = scmp.ne.s32.totalorder %s29, %s30
      %p41 = scmp.eq.s32.totalorder %s21, 0
      %p42 = por %p40, %p41
      %p43 = scmp.ne.s32.totalorder %s29, %s30
      %p44 = scmp.eq.s32.totalorder %s22, 1
      %p45 = por %p43, %p44
      %p47 = scmp.ne.s32.totalorder %s30, %s46
      %p48 = scmp.eq.s32.totalorder %s22, 0
      %p49 = por %p47, %p48
      %s50 = ssub.s32 %s16, %s23
      %p51 = scmp.eq.s32.totalorder %s50, 0
      %s53 = sadd.s32 %s52, 1
      %s54 = scalar_select %p51, %s52, %s53
      %p57 = pneg %p51
      %p58 = scmp.eq.s32.totalorder %s16, 1
      %p59 = por %p57, %p58
      %p60 = scmp.ne.s32.totalorder %s52, %s55
      %p61 = scmp.eq.s32.totalorder %s16, 0
      %p62 = por %p60, %p61
      %p63 = scmp.ne.s32.totalorder %s52, %s55
      %p64 = scmp.eq.s32.totalorder %s21, 1
      %p65 = por %p63, %p64
      %p66 = scmp.ne.s32.totalorder %s55, %s56
      %p67 = scmp.eq.s32.totalorder %s21, 0
      %p68 = por %p66, %p67
      %p69 = scmp.ne.s32.totalorder %s55, %s56
      %p70 = scmp.eq.s32.totalorder %s22, 1
      %p71 = por %p69, %p70
      %p73 = scmp.ne.s32.totalorder %s56, %s72
      %p74 = scmp.eq.s32.totalorder %s22, 0
      %p75 = por %p73, %p74
      %s77 = sadd.s32 %s76, 1
      %p80 = scmp.eq.s32.totalorder %s16, 1
      %p81 = scmp.ne.s32.totalorder %s76, %s78
      %p82 = scmp.eq.s32.totalorder %s16, 0
      %p83 = por %p81, %p82
      %p84 = scmp.ne.s32.totalorder %s76, %s78
      %p85 = scmp.eq.s32.totalorder %s21, 1
      %p86 = por %p84, %p85
      %p87 = scmp.ne.s32.totalorder %s78, %s79
      %p88 = scmp.eq.s32.totalorder %s21, 0
      %p89 = por %p87, %p88
      %p90 = scmp.ne.s32.totalorder %s78, %s79
      %p91 = scmp.eq.s32.totalorder %s22, 1
      %p92 = por %p90, %p91
      %p94 = scmp.ne.s32.totalorder %s79, %s93
      %p95 = scmp.eq.s32.totalorder %s22, 0
      %p96 = por %p94, %p95
      %s98 = sadd.s32 %s97, 1
      %p101 = scmp.eq.s32.totalorder %s16, 1
      %p102 = scmp.ne.s32.totalorder %s97, %s99
      %p103 = scmp.eq.s32.totalorder %s16, 0
      %p104 = por %p102, %p103
      %p105 = scmp.ne.s32.totalorder %s97, %s99
      %p106 = scmp.eq.s32.totalorder %s21, 1
      %p107 = por %p105, %p106
      %p108 = scmp.ne.s32.totalorder %s99, %s100
      %p109 = scmp.eq.s32.totalorder %s21, 0
      %p110 = por %p108, %p109
      %p111 = scmp.ne.s32.totalorder %s99, %s100
      %p112 = scmp.eq.s32.totalorder %s22, 1
      %p113 = por %p111, %p112
      %p115 = scmp.ne.s32.totalorder %s100, %s114
      %p116 = scmp.eq.s32.totalorder %s22, 0
      %p117 = por %p115, %p116
      %s119 = sadd.s32 %s118, 1
      %p122 = scmp.eq.s32.totalorder %s16, 1
      %p123 = scmp.ne.s32.totalorder %s118, %s120
      %p124 = scmp.eq.s32.totalorder %s16, 0
      %p125 = por %p123, %p124
      %p126 = scmp.ne.s32.totalorder %s118, %s120
      %p127 = scmp.eq.s32.totalorder %s21, 1
      %p128 = por %p126, %p127
      %p129 = scmp.ne.s32.totalorder %s120, %s121
      %p130 = scmp.eq.s32.totalorder %s21, 0
      %p131 = por %p129, %p130
      %p132 = scmp.ne.s32.totalorder %s120, %s121
      %p133 = scmp.eq.s32.totalorder %s22, 1
      %p134 = por %p132, %p133
      %p136 = scmp.ne.s32.totalorder %s121, %s135
      %p137 = scmp.eq.s32.totalorder %s22, 0
      %p138 = por %p136, %p137
      %s139 = ssub.s32 %s16, %s23
      %p140 = scmp.eq.s32.totalorder %s139, 0
      %s142 = sadd.s32 %s141, 1
      %s143 = scalar_select %p140, %s141, %s142
      %p146 = pneg %p140
      %p147 = scmp.eq.s32.totalorder %s16, 1
      %p148 = por %p146, %p147
      %p149 = scmp.ne.s32.totalorder %s141, %s144
      %p150 = scmp.eq.s32.totalorder %s16, 0
      %p151 = por %p149, %p150
      %p152 = scmp.ne.s32.totalorder %s141, %s144
      %p153 = scmp.eq.s32.totalorder %s21, 1
      %p154 = por %p152, %p153
      %p155 = scmp.ne.s32.totalorder %s144, %s145
      %p156 = scmp.eq.s32.totalorder %s21, 0
      %p157 = por %p155, %p156
      %p158 = scmp.ne.s32.totalorder %s144, %s145
      %p159 = scmp.eq.s32.totalorder %s22, 1
      %p160 = por %p158, %p159
      %p162 = scmp.ne.s32.totalorder %s145, %s161
      %p163 = scmp.eq.s32.totalorder %s22, 0
      %p164 = por %p162, %p163
      %s166 = sadd.s32 %s165, 1
      %p169 = scmp.eq.s32.totalorder %s16, 1
      %p170 = scmp.ne.s32.totalorder %s165, %s167
      %p171 = scmp.eq.s32.totalorder %s16, 0
      %p172 = por %p170, %p171
      %p173 = scmp.ne.s32.totalorder %s165, %s167
      %p174 = scmp.eq.s32.totalorder %s21, 1
      %p175 = por %p173, %p174
      %p176 = scmp.ne.s32.totalorder %s167, %s168
      %p177 = scmp.eq.s32.totalorder %s21, 0
      %p178 = por %p176, %p177
      %p179 = scmp.ne.s32.totalorder %s167, %s168
      %p180 = scmp.eq.s32.totalorder %s22, 1
      %p181 = por %p179, %p180
      %p183 = scmp.ne.s32.totalorder %s168, %s182
      %p184 = scmp.eq.s32.totalorder %s22, 0
      %p185 = por %p183, %p184
      %s187 = sadd.s32 %s186, 1
      %p190 = scmp.eq.s32.totalorder %s16, 1
      %p191 = scmp.ne.s32.totalorder %s186, %s188
      %p192 = scmp.eq.s32.totalorder %s16, 0
      %p193 = por %p191, %p192
      %p194 = scmp.ne.s32.totalorder %s186, %s188
      %p195 = scmp.eq.s32.totalorder %s21, 1
      %p196 = por %p194, %p195
      %p197 = scmp.ne.s32.totalorder %s188, %s189
      %p198 = scmp.eq.s32.totalorder %s21, 0
      %p199 = por %p197, %p198
      %p200 = scmp.ne.s32.totalorder %s188, %s189
      %p201 = scmp.eq.s32.totalorder %s22, 1
      %p202 = por %p200, %p201
      %p204 = scmp.ne.s32.totalorder %s189, %s203
      %p205 = scmp.eq.s32.totalorder %s22, 0
      %p206 = por %p204, %p205
      %p207 = scmp.le.s32.totalorder 1, %s16
      %p208 = scmp.lt.s32.totalorder %s16, 3
      %p209 = pnand %p207, %p208
      %p210 = pneg %p209
      // Predicated region
      $region9: #{vnet_lstm_forward.1} parent=5 // pred_check
        _
      $region10: #{vnet_lstm_forward.1} parent=5 // pred_check_branch
        %212 = sbr.rel (%p209) target = $region12
      $region11: #{vnet_lstm_forward.1} parent=5 // pred_region
        %s213 = ssub.s32 %s16, 1
        // Predicated region
        $region13: #{vnet_lstm_forward.1} parent=11 // pred_check
          %p214 = pneg %p89
        $region14: #{vnet_lstm_forward.1} parent=11 // pred_check_branch
          %216 = sbr.rel (%p214) target = $region16
        $region15: #{vnet_lstm_forward.1} parent=11 // pred_region
          _
        $region16: #{vnet_lstm_forward.1} parent=11 // pred_fallthru
          _
        // Predicated region
        $region17: #{vnet_lstm_forward.1} parent=11 // pred_check
          %p217 = pneg %p110
        $region18: #{vnet_lstm_forward.1} parent=11 // pred_check_branch
          %219 = sbr.rel (%p217) target = $region20
        $region19: #{vnet_lstm_forward.1} parent=11 // pred_region
          _
        $region20: #{vnet_lstm_forward.1} parent=11 // pred_fallthru
          _
        // Predicated region
        $region21: #{vnet_lstm_forward.1} parent=11 // pred_check
          %p220 = pneg %p131
        $region22: #{vnet_lstm_forward.1} parent=11 // pred_check_branch
          %222 = sbr.rel (%p220) target = $region24
        $region23: #{vnet_lstm_forward.1} parent=11 // pred_region
          _
        $region24: #{vnet_lstm_forward.1} parent=11 // pred_fallthru
          _
      $region12: #{vnet_lstm_forward.1} parent=5 // pred_fallthru
        _
      %p223 = scmp.lt.s32.totalorder %s16, 2
      // Predicated region
      $region25: #{vnet_lstm_forward.1} parent=5 // pred_check
        %p224 = pneg %p223
      $region26: #{vnet_lstm_forward.1} parent=5 // pred_check_branch
        %226 = sbr.rel (%p224) target = $region28
      $region27: #{vnet_lstm_forward.1} parent=5 // pred_region
        // Predicated region
        $region29: #{vnet_lstm_forward.1} parent=27 // pred_check
          %p227 = pneg %p36
        $region30: #{vnet_lstm_forward.1} parent=27 // pred_check_branch
          %229 = sbr.rel (%p227) target = $region32
        $region31: #{vnet_lstm_forward.1} parent=27 // pred_region
          %s230 = smul.u32 4, %s16
          %p231 = scmp.lt.s32.totalorder %s230, 7
          %s232 = scalar_select %p231, %s230, 7
          %s233 = smul.addr %s232, 4
          %s234 = scalar_lea.vmem %s0, %s233
          %s235 = smul.u32 4, %s16
        $region32: #{vnet_lstm_forward.1} parent=27 // pred_fallthru
          _
        // Predicated region
        $region33: #{vnet_lstm_forward.1} parent=27 // pred_check
          %p236 = pneg %p62
        $region34: #{vnet_lstm_forward.1} parent=27 // pred_check_branch
          %238 = sbr.rel (%p236) target = $region36
        $region35: #{vnet_lstm_forward.1} parent=27 // pred_region
          %s239 = smul.u32 4, %s16
          %p240 = scmp.lt.s32.totalorder %s239, 7
          %s241 = scalar_select %p240, %s239, 7
          %s242 = smul.addr %s241, 4
          %s243 = scalar_lea.vmem %s1, %s242
          %s244 = smul.u32 4, %s16
        $region36: #{vnet_lstm_forward.1} parent=27 // pred_fallthru
          _
      $region28: #{vnet_lstm_forward.1} parent=5 // pred_fallthru
        _
      %p245 = scmp.le.s32.totalorder 1, %s16
      %p246 = scmp.lt.s32.totalorder %s16, 3
      %p247 = pnand %p245, %p246
      %p248 = pneg %p247
      // Predicated region
      $region37: #{vnet_lstm_forward.1} parent=5 // pred_check
        _
      $region38: #{vnet_lstm_forward.1} parent=5 // pred_check_branch
        %250 = sbr.rel (%p247) target = $region40
      $region39: #{vnet_lstm_forward.1} parent=5 // pred_region
        %s251 = ssub.s32 %s16, 1
        %s252 = smul.u32 4, %s21
        %p253 = scmp.lt.s32.totalorder %s252, 7
        %s254 = scalar_select %p253, %s252, 7
        %s255 = smul.addr %s254, 4
        %s256 = scalar_lea.vmem %s0, %s255
        %p257 = pneg %p42
        %p258 = pneg %p39
        %s259 = smul.u32 4, %s21
        %p260 = scmp.lt.s32.totalorder %s259, 7
        %s261 = scalar_select %p260, %s259, 7
        %s262 = smul.addr %s261, 4
        %s263 = scalar_lea.vmem %s1, %s262
        %p264 = pneg %p68
        %p265 = pneg %p65
        %p266 = pneg %p89
        %p267 = pneg %p86
        %p268 = pneg %p110
        %p269 = pneg %p107
        %p270 = pneg %p131
        %p271 = pneg %p128
        %p272 = pneg %p157
        %p273 = pneg %p154
        %s274 = smul.u32 4, %s21
        %p275 = scmp.lt.s32.totalorder %s274, 7
        %s276 = scalar_select %p275, %s274, 7
        %s277 = smul.addr %s276, 4
        %s278 = scalar_lea.vmem %s5, %s277
        %p279 = pneg %p178
        %p280 = pneg %p175
        %p281 = pneg %p199
        %p282 = pneg %p196
        %s283 = smul.u32 4, %s21
        %p284 = scmp.lt.s32.totalorder %s283, 7
        %s285 = scalar_select %p284, %s283, 7
        %s286 = smul.addr %s285, 4
        %s287 = scalar_lea.vmem %s0, %s286
        %s288 = smul.u32 4, %s21
        %s289 = smul.u32 4, %s21
        %p290 = scmp.lt.s32.totalorder %s289, 7
        %s291 = scalar_select %p290, %s289, 7
        %s292 = smul.addr %s291, 4
        %s293 = scalar_lea.vmem %s1, %s292
        %s294 = smul.u32 4, %s21
        %s295 = smul.u32 4, %s21
        %p296 = scmp.lt.s32.totalorder %s295, 7
        %s297 = scalar_select %p296, %s295, 7
        %s298 = smul.addr %s297, 4
        %s299 = scalar_lea.vmem %s5, %s298
        %s300 = smul.u32 4, %s21
        %p301 = scmp.eq.s32.totalorder %s21, 0
        // Predicated region
        $region41: #{vnet_lstm_forward.1} parent=39 // pred_check
          %p302 = pneg %p301
        $region42: #{vnet_lstm_forward.1} parent=39 // pred_check_branch
          %304 = sbr.rel (%p302) target = $region44
        $region43: #{vnet_lstm_forward.1} parent=39 // pred_region
          %v305 = vld [vmem:[%s2] sm:$0xf]
          %vm306 = vcmask 257024
          %307 = vst.msk [vmem:[#allocation2] sm:$0xf] %vm306, %v305
          %v308 = vld [vmem:[%s3] sm:$0xf]
          %309 = vst.msk [vmem:[#allocation4] sm:$0xf] %vm306, %v308
        $region44: #{vnet_lstm_forward.1} parent=39 // pred_fallthru
          _
        %v310 = vld [vmem:[%s4] sm:$0xff]
        %v311 = vld [vmem:[%s4 + $0x8] sm:$0xff]
        %v312 = vld [vmem:[%s4 + $0x10] sm:$0xff]
        %v313 = vld [vmem:[%s4 + $0x18] sm:$0xff]
        %v314 = vld [vmem:[#allocation2] sm:$0xf]
        %v315 = vld [vmem:[#allocation4] sm:$0xf]
        %v316 = vld [vmem:[%s293] sm:$0xf]
        %v317 = vsub.f32 1.0, %v316
        %319 = vset.pattern.permute.xlu0 0
        %320 = vperm.xlu0 %319, %v317
        %v321 = vpop.permute.xlu0 %320
        %v323 = vmul.f32 %v314, %v321
        %v324 = vmul.f32 %v315, %v321
        %v325 = vld [vmem:[%s287] sm:$0xf]
        %vm326 = vcmask 261120
        %v328 = vsel %vm326, %v323, 0
        %330 = vmatprep.subr.mxu0 0.0
        %331 = vmatpush1.msra.mxu0 %v310
        %332 = vmatprep.subr.mxu0 0.0
        %333 = vmatpush1.msra.mxu0 %v311
        %334 = vmatprep.subr.mxu0 0.0
        %335 = vmatpush1.msra.mxu0 %v312
        %336 = vmatprep.subr.mxu0 0.0
        %337 = vmatpush1.msra.mxu0 %v313
        %338 = vmatprep.subr.mxu0 0.0
        %339 = vmatpush1.msra.mxu0 0.0
        %340 = vmatprep.subr.mxu0 0.0
        %341 = vmatpush1.msra.mxu0 0.0
        %342 = vmatprep.subr.mxu0 0.0
        %343 = vmatpush1.msra.mxu0 0.0
        %344 = vmatprep.subr.mxu0 0.0
        %345 = vmatpush1.msra.mxu0 0.0
        %346 = vmatprep.subr.mxu0 0.0
        %347 = vmatpush1.msra.mxu0 0.0
        %348 = vmatprep.subr.mxu0 0.0
        %349 = vmatpush1.msra.mxu0 0.0
        %350 = vmatprep.subr.mxu0 0.0
        %351 = vmatpush1.msra.mxu0 0.0
        %352 = vmatprep.subr.mxu0 0.0
        %353 = vmatpush1.msra.mxu0 0.0
        %354 = vmatprep.subr.mxu0 0.0
        %355 = vmatpush1.msra.mxu0 0.0
        %356 = vmatprep.subr.mxu0 0.0
        %357 = vmatpush1.msra.mxu0 0.0
        %358 = vmatprep.subr.mxu0 0.0
        %359 = vmatpush1.msra.mxu0 0.0
        %360 = vmatprep.subr.mxu0 0.0
        %361 = vmatpush1.msra.mxu0 0.0
        %362 = vmatprep.subr.mxu0 0.0
        %363 = vmatpush1.msra.mxu0 0.0
        %364 = vmatprep.subr.mxu0 0.0
        %365 = vmatpush1.msra.mxu0 0.0
        %366 = vmatprep.subr.mxu0 0.0
        %367 = vmatpush1.msra.mxu0 0.0
        %368 = vmatprep.subr.mxu0 0.0
        %369 = vmatpush1.msra.mxu0 0.0
        %370 = vmatprep.subr.mxu0 0.0
        %371 = vmatpush1.msra.mxu0 0.0
        %372 = vmatprep.subr.mxu0 0.0
        %373 = vmatpush1.msra.mxu0 0.0
        %374 = vmatprep.subr.mxu0 0.0
        %375 = vmatpush1.msra.mxu0 0.0
        %376 = vmatprep.subr.mxu0 0.0
        %377 = vmatpush1.msra.mxu0 0.0
        %378 = vmatprep.subr.mxu0 0.0
        %379 = vmatpush1.msra.mxu0 0.0
        %380 = vmatprep.subr.mxu0 0.0
        %381 = vmatpush1.msra.mxu0 0.0
        %382 = vmatprep.subr.mxu0 0.0
        %383 = vmatpush1.msra.mxu0 0.0
        %384 = vmatprep.subr.mxu0 0.0
        %385 = vmatpush1.msra.mxu0 0.0
        %386 = vmatprep.subr.mxu0 0.0
        %387 = vmatpush1.msra.mxu0 0.0
        %388 = vmatprep.subr.mxu0 0.0
        %389 = vmatpush1.msra.mxu0 0.0
        %390 = vmatprep.subr.mxu0 0.0
        %391 = vmatpush1.msra.mxu0 0.0
        %392 = vmatprep.subr.mxu0 0.0
        %393 = vmatpush1.msra.mxu0 0.0
        %394 = vmatprep.mubr.f32.mxu0 0.0
        %395 = vmatmul.mubr.f32.gmra.mrb[0].mxu0 %v328
        %v396 = vpop.f32.mrb[0].mxu0
        %v397 = vadd.f32 0.0, %v396
        %v398 = vpop.f32.mrb[0].mxu0
        %399 = vdwg.mxu0
        %v400 = vadd.f32 %v325, %v397
        %v401 = vmul.f32 %v400, 0.5
        %v402 = vtanh.pop %v401
        %v403 = vadd.f32 %v402, 1.0
        %v404 = vmul.f32 %v403, 0.5
        %v405 = vtanh.pop %v400
        %407 = vrot.lane.b32.xlu0 %v324, 32
        %v408 = vpop.permute.xlu0 %407
        %v410 = vmul.f32 %v404, %v408
        %412 = vrot.lane.b32.xlu0 %v405, 32
        %v413 = vpop.permute.xlu0 %412
        %v415 = vmul.f32 %v404, %v413
        %417 = vrot.lane.b32.xlu0 %v415, 32
        %v418 = vpop.permute.xlu0 %417
        %v420 = vadd.f32 %v410, %v418
        %v421 = vtanh.pop %v420
        %423 = vrot.lane.b32.xlu0 %v421, 32
        %v424 = vpop.permute.xlu0 %423
        %v426 = vmul.f32 %v404, %v424
        %428 = vrot.lane.b32.xlu0 %v426, 64
        %v429 = vpop.permute.xlu0 %428
        %vm431 = vcmask 257024
        %432 = vst.msk [vmem:[%s299] sm:$0xf] %vm431, %v429
        %s433 = scalar_lea.vmem %s293, 4
        %v434 = vld [vmem:[%s433] sm:$0xf]
        %v435 = vsub.f32 1.0, %v434
        %437 = vset.pattern.permute.xlu0 0
        %438 = vperm.xlu0 %437, %v435
        %v439 = vpop.permute.xlu0 %438
        %v441 = vmul.f32 %v426, %v439
        %v442 = vmul.f32 %v420, %v439
        %s443 = scalar_lea.vmem %s287, 4
        %v444 = vld [vmem:[%s443] sm:$0xf]
        %446 = vrot.lane.b32.xlu0 %v441, 64
        %v447 = vpop.permute.xlu0 %446
        %v448 = vsel %vm326, %v447, 0
        %450 = vmatprep.subr.mxu0 0.0
        %451 = vmatpush1.msra.mxu0 %v310
        %452 = vmatprep.subr.mxu0 0.0
        %453 = vmatpush1.msra.mxu0 %v311
        %454 = vmatprep.subr.mxu0 0.0
        %455 = vmatpush1.msra.mxu0 %v312
        %456 = vmatprep.subr.mxu0 0.0
        %457 = vmatpush1.msra.mxu0 %v313
        %458 = vmatprep.subr.mxu0 0.0
        %459 = vmatpush1.msra.mxu0 0.0
        %460 = vmatprep.subr.mxu0 0.0
        %461 = vmatpush1.msra.mxu0 0.0
        %462 = vmatprep.subr.mxu0 0.0
        %463 = vmatpush1.msra.mxu0 0.0
        %464 = vmatprep.subr.mxu0 0.0
        %465 = vmatpush1.msra.mxu0 0.0
        %466 = vmatprep.subr.mxu0 0.0
        %467 = vmatpush1.msra.mxu0 0.0
        %468 = vmatprep.subr.mxu0 0.0
        %469 = vmatpush1.msra.mxu0 0.0
        %470 = vmatprep.subr.mxu0 0.0
        %471 = vmatpush1.msra.mxu0 0.0
        %472 = vmatprep.subr.mxu0 0.0
        %473 = vmatpush1.msra.mxu0 0.0
        %474 = vmatprep.subr.mxu0 0.0
        %475 = vmatpush1.msra.mxu0 0.0
        %476 = vmatprep.subr.mxu0 0.0
        %477 = vmatpush1.msra.mxu0 0.0
        %478 = vmatprep.subr.mxu0 0.0
        %479 = vmatpush1.msra.mxu0 0.0
        %480 = vmatprep.subr.mxu0 0.0
        %481 = vmatpush1.msra.mxu0 0.0
        %482 = vmatprep.subr.mxu0 0.0
        %483 = vmatpush1.msra.mxu0 0.0
        %484 = vmatprep.subr.mxu0 0.0
        %485 = vmatpush1.msra.mxu0 0.0
        %486 = vmatprep.subr.mxu0 0.0
        %487 = vmatpush1.msra.mxu0 0.0
        %488 = vmatprep.subr.mxu0 0.0
        %489 = vmatpush1.msra.mxu0 0.0
        %490 = vmatprep.subr.mxu0 0.0
        %491 = vmatpush1.msra.mxu0 0.0
        %492 = vmatprep.subr.mxu0 0.0
        %493 = vmatpush1.msra.mxu0 0.0
        %494 = vmatprep.subr.mxu0 0.0
        %495 = vmatpush1.msra.mxu0 0.0
        %496 = vmatprep.subr.mxu0 0.0
        %497 = vmatpush1.msra.mxu0 0.0
        %498 = vmatprep.subr.mxu0 0.0
        %499 = vmatpush1.msra.mxu0 0.0
        %500 = vmatprep.subr.mxu0 0.0
        %501 = vmatpush1.msra.mxu0 0.0
        %502 = vmatprep.subr.mxu0 0.0
        %503 = vmatpush1.msra.mxu0 0.0
        %504 = vmatprep.subr.mxu0 0.0
        %505 = vmatpush1.msra.mxu0 0.0
        %506 = vmatprep.subr.mxu0 0.0
        %507 = vmatpush1.msra.mxu0 0.0
        %508 = vmatprep.subr.mxu0 0.0
        %509 = vmatpush1.msra.mxu0 0.0
        %510 = vmatprep.subr.mxu0 0.0
        %511 = vmatpush1.msra.mxu0 0.0
        %512 = vmatprep.subr.mxu0 0.0
        %513 = vmatpush1.msra.mxu0 0.0
        %514 = vmatprep.mubr.f32.mxu0 0.0
        %515 = vmatmul.mubr.f32.gmra.mrb[0].mxu0 %v448
        %v516 = vpop.f32.mrb[0].mxu0
        %v517 = vadd.f32 0.0, %v516
        %v518 = vpop.f32.mrb[0].mxu0
        %519 = vdwg.mxu0
        %v520 = vadd.f32 %v444, %v517
        %v521 = vmul.f32 %v520, 0.5
        %v522 = vtanh.pop %v521
        %v523 = vadd.f32 %v522, 1.0
        %v524 = vmul.f32 %v523, 0.5
        %v525 = vtanh.pop %v520
        %v526 = vmul.f32 %v524, %v442
        %528 = vrot.lane.b32.xlu0 %v525, 32
        %v529 = vpop.permute.xlu0 %528
        %v531 = vmul.f32 %v524, %v529
        %533 = vrot.lane.b32.xlu0 %v531, 32
        %v534 = vpop.permute.xlu0 %533
        %v536 = vadd.f32 %v526, %v534
        %v537 = vtanh.pop %v536
        %539 = vrot.lane.b32.xlu0 %v537, 32
        %v540 = vpop.permute.xlu0 %539
        %v542 = vmul.f32 %v524, %v540
        %544 = vrot.lane.b32.xlu0 %v542, 64
        %v545 = vpop.permute.xlu0 %544
        %s547 = scalar_lea.vmem %s299, 4
        %548 = vst.msk [vmem:[%s547] sm:$0xf] %vm431, %v545
        %s549 = scalar_lea.vmem %s293, 8
        %v550 = vld [vmem:[%s549] sm:$0xf]
        %v551 = vsub.f32 1.0, %v550
        %553 = vset.pattern.permute.xlu0 0
        %554 = vperm.xlu0 %553, %v551
        %v555 = vpop.permute.xlu0 %554
        %v557 = vmul.f32 %v542, %v555
        %v558 = vmul.f32 %v536, %v555
        %s559 = scalar_lea.vmem %s287, 8
        %v560 = vld [vmem:[%s559] sm:$0xf]
        %562 = vrot.lane.b32.xlu0 %v557, 64
        %v563 = vpop.permute.xlu0 %562
        %v564 = vsel %vm326, %v563, 0
        %566 = vmatprep.subr.mxu0 0.0
        %567 = vmatpush1.msra.mxu0 %v310
        %568 = vmatprep.subr.mxu0 0.0
        %569 = vmatpush1.msra.mxu0 %v311
        %570 = vmatprep.subr.mxu0 0.0
        %571 = vmatpush1.msra.mxu0 %v312
        %572 = vmatprep.subr.mxu0 0.0
        %573 = vmatpush1.msra.mxu0 %v313
        %574 = vmatprep.subr.mxu0 0.0
        %575 = vmatpush1.msra.mxu0 0.0
        %576 = vmatprep.subr.mxu0 0.0
        %577 = vmatpush1.msra.mxu0 0.0
        %578 = vmatprep.subr.mxu0 0.0
        %579 = vmatpush1.msra.mxu0 0.0
        %580 = vmatprep.subr.mxu0 0.0
        %581 = vmatpush1.msra.mxu0 0.0
        %582 = vmatprep.subr.mxu0 0.0
        %583 = vmatpush1.msra.mxu0 0.0
        %584 = vmatprep.subr.mxu0 0.0
        %585 = vmatpush1.msra.mxu0 0.0
        %586 = vmatprep.subr.mxu0 0.0
        %587 = vmatpush1.msra.mxu0 0.0
        %588 = vmatprep.subr.mxu0 0.0
        %589 = vmatpush1.msra.mxu0 0.0
        %590 = vmatprep.subr.mxu0 0.0
        %591 = vmatpush1.msra.mxu0 0.0
        %592 = vmatprep.subr.mxu0 0.0
        %593 = vmatpush1.msra.mxu0 0.0
        %594 = vmatprep.subr.mxu0 0.0
        %595 = vmatpush1.msra.mxu0 0.0
        %596 = vmatprep.subr.mxu0 0.0
        %597 = vmatpush1.msra.mxu0 0.0
        %598 = vmatprep.subr.mxu0 0.0
        %599 = vmatpush1.msra.mxu0 0.0
        %600 = vmatprep.subr.mxu0 0.0
        %601 = vmatpush1.msra.mxu0 0.0
        %602 = vmatprep.subr.mxu0 0.0
        %603 = vmatpush1.msra.mxu0 0.0
        %604 = vmatprep.subr.mxu0 0.0
        %605 = vmatpush1.msra.mxu0 0.0
        %606 = vmatprep.subr.mxu0 0.0
        %607 = vmatpush1.msra.mxu0 0.0
        %608 = vmatprep.subr.mxu0 0.0
        %609 = vmatpush1.msra.mxu0 0.0
        %610 = vmatprep.subr.mxu0 0.0
        %611 = vmatpush1.msra.mxu0 0.0
        %612 = vmatprep.subr.mxu0 0.0
        %613 = vmatpush1.msra.mxu0 0.0
        %614 = vmatprep.subr.mxu0 0.0
        %615 = vmatpush1.msra.mxu0 0.0
        %616 = vmatprep.subr.mxu0 0.0
        %617 = vmatpush1.msra.mxu0 0.0
        %618 = vmatprep.subr.mxu0 0.0
        %619 = vmatpush1.msra.mxu0 0.0
        %620 = vmatprep.subr.mxu0 0.0
        %621 = vmatpush1.msra.mxu0 0.0
        %622 = vmatprep.subr.mxu0 0.0
        %623 = vmatpush1.msra.mxu0 0.0
        %624 = vmatprep.subr.mxu0 0.0
        %625 = vmatpush1.msra.mxu0 0.0
        %626 = vmatprep.subr.mxu0 0.0
        %627 = vmatpush1.msra.mxu0 0.0
        %628 = vmatprep.subr.mxu0 0.0
        %629 = vmatpush1.msra.mxu0 0.0
        %630 = vmatprep.mubr.f32.mxu0 0.0
        %631 = vmatmul.mubr.f32.gmra.mrb[0].mxu0 %v564
        %v632 = vpop.f32.mrb[0].mxu0
        %v633 = vadd.f32 0.0, %v632
        %v634 = vpop.f32.mrb[0].mxu0
        %635 = vdwg.mxu0
        %v636 = vadd.f32 %v560, %v633
        %v637 = vmul.f32 %v636, 0.5
        %v638 = vtanh.pop %v637
        %v639 = vadd.f32 %v638, 1.0
        %v640 = vmul.f32 %v639, 0.5
        %v641 = vtanh.pop %v636
        %v642 = vmul.f32 %v640, %v558
        %644 = vrot.lane.b32.xlu0 %v641, 32
        %v645 = vpop.permute.xlu0 %644
        %v647 = vmul.f32 %v640, %v645
        %649 = vrot.lane.b32.xlu0 %v647, 32
        %v650 = vpop.permute.xlu0 %649
        %v652 = vadd.f32 %v642, %v650
        %v653 = vtanh.pop %v652
        %655 = vrot.lane.b32.xlu0 %v653, 32
        %v656 = vpop.permute.xlu0 %655
        %v658 = vmul.f32 %v640, %v656
        %660 = vrot.lane.b32.xlu0 %v658, 64
        %v661 = vpop.permute.xlu0 %660
        %s663 = scalar_lea.vmem %s299, 8
        %664 = vst.msk [vmem:[%s663] sm:$0xf] %vm431, %v661
        %s665 = scalar_lea.vmem %s293, 12
        %v666 = vld [vmem:[%s665] sm:$0xf]
        %v667 = vsub.f32 1.0, %v666
        %669 = vset.pattern.permute.xlu0 0
        %670 = vperm.xlu0 %669, %v667
        %v671 = vpop.permute.xlu0 %670
        %v673 = vmul.f32 %v658, %v671
        %v674 = vmul.f32 %v652, %v671
        %s675 = scalar_lea.vmem %s287, 12
        %v676 = vld [vmem:[%s675] sm:$0xf]
        %678 = vrot.lane.b32.xlu0 %v673, 64
        %v679 = vpop.permute.xlu0 %678
        %v680 = vsel %vm326, %v679, 0
        %682 = vmatprep.subr.mxu0 0.0
        %683 = vmatpush1.msra.mxu0 %v310
        %684 = vmatprep.subr.mxu0 0.0
        %685 = vmatpush1.msra.mxu0 %v311
        %686 = vmatprep.subr.mxu0 0.0
        %687 = vmatpush1.msra.mxu0 %v312
        %688 = vmatprep.subr.mxu0 0.0
        %689 = vmatpush1.msra.mxu0 %v313
        %690 = vmatprep.subr.mxu0 0.0
        %691 = vmatpush1.msra.mxu0 0.0
        %692 = vmatprep.subr.mxu0 0.0
        %693 = vmatpush1.msra.mxu0 0.0
        %694 = vmatprep.subr.mxu0 0.0
        %695 = vmatpush1.msra.mxu0 0.0
        %696 = vmatprep.subr.mxu0 0.0
        %697 = vmatpush1.msra.mxu0 0.0
        %698 = vmatprep.subr.mxu0 0.0
        %699 = vmatpush1.msra.mxu0 0.0
        %700 = vmatprep.subr.mxu0 0.0
        %701 = vmatpush1.msra.mxu0 0.0
        %702 = vmatprep.subr.mxu0 0.0
        %703 = vmatpush1.msra.mxu0 0.0
        %704 = vmatprep.subr.mxu0 0.0
        %705 = vmatpush1.msra.mxu0 0.0
        %706 = vmatprep.subr.mxu0 0.0
        %707 = vmatpush1.msra.mxu0 0.0
        %708 = vmatprep.subr.mxu0 0.0
        %709 = vmatpush1.msra.mxu0 0.0
        %710 = vmatprep.subr.mxu0 0.0
        %711 = vmatpush1.msra.mxu0 0.0
        %712 = vmatprep.subr.mxu0 0.0
        %713 = vmatpush1.msra.mxu0 0.0
        %714 = vmatprep.subr.mxu0 0.0
        %715 = vmatpush1.msra.mxu0 0.0
        %716 = vmatprep.subr.mxu0 0.0
        %717 = vmatpush1.msra.mxu0 0.0
        %718 = vmatprep.subr.mxu0 0.0
        %719 = vmatpush1.msra.mxu0 0.0
        %720 = vmatprep.subr.mxu0 0.0
        %721 = vmatpush1.msra.mxu0 0.0
        %722 = vmatprep.subr.mxu0 0.0
        %723 = vmatpush1.msra.mxu0 0.0
        %724 = vmatprep.subr.mxu0 0.0
        %725 = vmatpush1.msra.mxu0 0.0
        %726 = vmatprep.subr.mxu0 0.0
        %727 = vmatpush1.msra.mxu0 0.0
        %728 = vmatprep.subr.mxu0 0.0
        %729 = vmatpush1.msra.mxu0 0.0
        %730 = vmatprep.subr.mxu0 0.0
        %731 = vmatpush1.msra.mxu0 0.0
        %732 = vmatprep.subr.mxu0 0.0
        %733 = vmatpush1.msra.mxu0 0.0
        %734 = vmatprep.subr.mxu0 0.0
        %735 = vmatpush1.msra.mxu0 0.0
        %736 = vmatprep.subr.mxu0 0.0
        %737 = vmatpush1.msra.mxu0 0.0
        %738 = vmatprep.subr.mxu0 0.0
        %739 = vmatpush1.msra.mxu0 0.0
        %740 = vmatprep.subr.mxu0 0.0
        %741 = vmatpush1.msra.mxu0 0.0
        %742 = vmatprep.subr.mxu0 0.0
        %743 = vmatpush1.msra.mxu0 0.0
        %744 = vmatprep.subr.mxu0 0.0
        %745 = vmatpush1.msra.mxu0 0.0
        %746 = vmatprep.mubr.f32.mxu0 0.0
        %747 = vmatmul.mubr.f32.gmra.mrb[0].mxu0 %v680
        %v748 = vpop.f32.mrb[0].mxu0
        %v749 = vadd.f32 0.0, %v748
        %v750 = vpop.f32.mrb[0].mxu0
        %751 = vdwg.mxu0
        %v752 = vadd.f32 %v676, %v749
        %v753 = vmul.f32 %v752, 0.5
        %v754 = vtanh.pop %v753
        %v755 = vadd.f32 %v754, 1.0
        %v756 = vmul.f32 %v755, 0.5
        %v757 = vtanh.pop %v752
        %v758 = vmul.f32 %v756, %v674
        %760 = vrot.lane.b32.xlu0 %v757, 32
        %v761 = vpop.permute.xlu0 %760
        %v763 = vmul.f32 %v756, %v761
        %765 = vrot.lane.b32.xlu0 %v763, 32
        %v766 = vpop.permute.xlu0 %765
        %v768 = vadd.f32 %v758, %v766
        %v769 = vtanh.pop %v768
        %771 = vrot.lane.b32.xlu0 %v769, 32
        %v772 = vpop.permute.xlu0 %771
        %v774 = vmul.f32 %v756, %v772
        %776 = vrot.lane.b32.xlu0 %v774, 64
        %v777 = vpop.permute.xlu0 %776
        %s779 = scalar_lea.vmem %s299, 12
        %780 = vst.msk [vmem:[%s779] sm:$0xf] %vm431, %v777
        %781 = vst.msk [vmem:[#allocation2] sm:$0xf] %vm431, %v777
        %783 = vrot.lane.b32.xlu0 %v768, 96
        %v784 = vpop.permute.xlu0 %783
        %786 = vst.msk [vmem:[#allocation4] sm:$0xf] %vm431, %v784
        %s787 = smul.u32 4, %s21
        %p788 = scmp.lt.s32.totalorder %s787, 7
        %s789 = scalar_select %p788, %s787, 7
        %s790 = smul.addr %s789, 4
        %s791 = scalar_lea.vmem %s5, %s790
        // Predicated region
        $region45: #{vnet_lstm_forward.1} parent=39 // pred_check
          %p792 = pneg %p154
        $region46: #{vnet_lstm_forward.1} parent=39 // pred_check_branch
          %794 = sbr.rel (%p792) target = $region48
        $region47: #{vnet_lstm_forward.1} parent=39 // pred_region
          %s795 = smul.u32 4, %s21
        $region48: #{vnet_lstm_forward.1} parent=39 // pred_fallthru
          _
        // Predicated region
        $region49: #{vnet_lstm_forward.1} parent=39 // pred_check
          %p796 = pneg %p175
        $region50: #{vnet_lstm_forward.1} parent=39 // pred_check_branch
          %798 = sbr.rel (%p796) target = $region52
        $region51: #{vnet_lstm_forward.1} parent=39 // pred_region
          %s800 = ssub.s32 64, 64
          %801 = vsyncadd [#allocation3], %s800
          %s803 = sshll.u32 [#allocation2], 4
          %s804 = int_to_ptr.vmem [resolvable:$true] %s803
          %806 = dma.vmem_to_hbm [thread:$0]  %s804, 64, %s6, [#allocation3]
        $region52: #{vnet_lstm_forward.1} parent=39 // pred_fallthru
          _
        // Predicated region
        $region53: #{vnet_lstm_forward.1} parent=39 // pred_check
          %p807 = pneg %p196
        $region54: #{vnet_lstm_forward.1} parent=39 // pred_check_branch
          %809 = sbr.rel (%p807) target = $region56
        $region55: #{vnet_lstm_forward.1} parent=39 // pred_region
          %s811 = ssub.s32 64, 64
          %812 = vsyncadd [#allocation5], %s811
          %s814 = sshll.u32 [#allocation4], 4
          %s815 = int_to_ptr.vmem [resolvable:$true] %s814
          %817 = dma.vmem_to_hbm [thread:$0]  %s815, 64, %s7, [#allocation5]
        $region56: #{vnet_lstm_forward.1} parent=39 // pred_fallthru
          _
        // Predicated region
        $region57: #{vnet_lstm_forward.1} parent=39 // pred_check
          %p818 = pneg %p175
        $region58: #{vnet_lstm_forward.1} parent=39 // pred_check_branch
          %820 = sbr.rel (%p818) target = $region60
        $region59: #{vnet_lstm_forward.1} parent=39 // pred_region
          %821 = dma.done [#allocation3], 64
        $region60: #{vnet_lstm_forward.1} parent=39 // pred_fallthru
          _
        // Predicated region
        $region61: #{vnet_lstm_forward.1} parent=39 // pred_check
          %p822 = pneg %p196
        $region62: #{vnet_lstm_forward.1} parent=39 // pred_check_branch
          %824 = sbr.rel (%p822) target = $region64
        $region63: #{vnet_lstm_forward.1} parent=39 // pred_region
          %825 = dma.done [#allocation5], 64
        $region64: #{vnet_lstm_forward.1} parent=39 // pred_fallthru
          _
      $region40: #{vnet_lstm_forward.1} parent=5 // pred_fallthru
        _
      %p826 = scmp.le.s32.totalorder 2, %s16
      // Predicated region
      $region65: #{vnet_lstm_forward.1} parent=5 // pred_check
        %p827 = pneg %p826
      $region66: #{vnet_lstm_forward.1} parent=5 // pred_check_branch
        %829 = sbr.rel (%p827) target = $region68
      $region67: #{vnet_lstm_forward.1} parent=5 // pred_region
        %s830 = ssub.s32 %s16, 2
        // Predicated region
        $region69: #{vnet_lstm_forward.1} parent=67 // pred_check
          %p831 = pneg %p160
        $region70: #{vnet_lstm_forward.1} parent=67 // pred_check_branch
          %833 = sbr.rel (%p831) target = $region72
        $region71: #{vnet_lstm_forward.1} parent=67 // pred_region
          %s834 = smul.u32 4, %s22
          %p835 = scmp.lt.s32.totalorder %s834, 7
          %s836 = scalar_select %p835, %s834, 7
          %s837 = smul.addr %s836, 4
          %s838 = scalar_lea.vmem %s5, %s837
        $region72: #{vnet_lstm_forward.1} parent=67 // pred_fallthru
          _
      $region68: #{vnet_lstm_forward.1} parent=5 // pred_fallthru
        _
    $region6: #{vnet_lstm_forward.1} parent=1 // loop_footer
      %s20 = sadd.s32 1, %s16
    $region7: #{vnet_lstm_forward.1} parent=1 // loop_footer_branch
      %15 = sbr.rel target = $region3
    $region8: #{vnet_lstm_forward.1} parent=1 // loop_exit
      _
    %839 = vsyncpa [#allocation3], 1
    %s840 = scalar_lea.sflag [#allocation3], 1
    %841 = vsyncpa %s840, 1
    %842 = vsyncpa [#allocation5], 1

</llo_original>
